<compile_context>
chip_gen: v5e
topology: v5e:2x2
jax: 0.10.0
libtpu: 0.0.40
codegen_flags: <defaults>
</compile_context>

<pallas_src>
import functools
import numpy as np

import jax
import jax.numpy as jnp
from jax.experimental import pallas as pl
from jax.experimental.pallas import tpu as pltpu

EPS = 1e-5  # nn.LayerNorm default eps

_COMPILER_PARAMS = pltpu.CompilerParams(
    dimension_semantics=("parallel",),          # independent blocks -> megacore-shardable
    vmem_limit_bytes=48 * 1024 * 1024,          # explicit budget; safe on v7x's 64 MiB VMEM
)


# ----------------------------- in-kernel helpers -----------------------------

def _layernorm(x, g, b):
    """LayerNorm over the last dim; stats in f32.  g/b are (1, C) and broadcast."""
    x = x.astype(jnp.float32)
    mu = jnp.mean(x, axis=-1, keepdims=True)
    var = jnp.mean(jnp.square(x - mu), axis=-1, keepdims=True)
    return (x - mu) * jax.lax.rsqrt(var + EPS) * g + b


def _bmm(x3, w2d):
    """(G, N, K) @ (K, D) -> (G, N, D); bf16 MXU passes, f32 accumulation.

    The 2-D weight is broadcast over the G batch so the contraction is a rank-3 batched
    dot_general (well-supported Mosaic pattern, no in-kernel reshapes needed).
    """
    g = x3.shape[0]
    wb = jnp.broadcast_to(w2d, (g,) + w2d.shape)
    return jnp.einsum("gnk,gkd->gnd", x3.astype(jnp.bfloat16), wb,
                      preferred_element_type=jnp.float32)


def _mha_batched(xn, wqkv, wproj, bproj, num_heads, scale, rel_bias=None, mask=None):
    """Multi-head self-attention on an LN'd (G, N, C) tile, batched over the G regions.

    wqkv (C, 3C) / wproj (C, C) are bf16; bproj (1, C) f32.
    rel_bias: optional (H, N, N) f32 additive pre-softmax bias.
    mask:     optional (G, N, N) f32 additive attention mask (broadcast over heads).
    Returns (G, N, C) f32.
    """
    g, n, c = xn.shape
    hd = c // num_heads

    qkv = _bmm(xn, wqkv)                                   # (G, N, 3C), f32
    outs = []
    for h in range(num_heads):                             # heads unrolled at trace time;
        q = qkv[:, :, h * hd:(h + 1) * hd]                 # each head batched over G regions
        k = qkv[:, :, c + h * hd:c + (h + 1) * hd]
        v = qkv[:, :, 2 * c + h * hd:2 * c + (h + 1) * hd]
        s = jnp.einsum("gnd,gmd->gnm", q.astype(jnp.bfloat16), k.astype(jnp.bfloat16),
                       preferred_element_type=jnp.float32) * scale
        if rel_bias is not None:
            s = s + rel_bias[h][None, :, :]
        if mask is not None:
            s = s + mask
        s = s - jnp.max(s, axis=-1, keepdims=True)
        p = jnp.exp(s)
        p = p * pl.reciprocal(jnp.sum(p, axis=-1, keepdims=True), approx=True)
        outs.append(jnp.einsum("gnm,gmd->gnd", p.astype(jnp.bfloat16), v.astype(jnp.bfloat16),
                               preferred_element_type=jnp.float32))
    o = jnp.concatenate(outs, axis=-1)                     # (G, N, C), head-major == torch reshape
    return _bmm(o, wproj) + bproj


# --------------------------------- kernels -----------------------------------

def _cls_attn_kernel(cls_ref, g_ref, b_ref, wqkv_ref, wproj_ref, bproj_ref, o_ref,
                     *, num_heads, scale):
    x = cls_ref[...].astype(jnp.float32)                   # (Gb, R, C)
    xn = _layernorm(x, g_ref[...], b_ref[...])
    y = _mha_batched(xn, wqkv_ref[...], wproj_ref[...], bproj_ref[...], num_heads, scale)
    o_ref[...] = (x + y).astype(o_ref.dtype)               # residual


def _local_ffn_kernel(*refs, num_heads, scale, has_mask, has_expand):
    """Fused: windowed attention (+rel-pos bias, +optional mask) + residual + FFN + expand."""
    refs = list(refs)
    o_ref = refs.pop()                                     # output ref is last
    it = iter(refs)
    out_ref, cls_ref = next(it), next(it)
    mask_ref = next(it) if has_mask else None
    rel_ref = next(it)
    ln1g, ln1b = next(it), next(it)
    wqkv, wproj, bproj = next(it), next(it), next(it)
    ln2g, ln2b = next(it), next(it)
    w1, b1, w2, b2 = next(it), next(it), next(it), next(it)
    if has_expand:
        lneg, lneb, we, be = next(it), next(it), next(it), next(it)

    # splice the (already attended) cls token into row 0 — replaces the HBM-level concat.
    x = out_ref[...].astype(jnp.float32)                   # (G, N, C), row 0 is the stale cls
    cls = cls_ref[...].astype(jnp.float32)                 # (G, 1, C), updated cls
    row = jax.lax.broadcasted_iota(jnp.int32, x.shape, 1)
    x = jnp.where(row == 0, jnp.broadcast_to(cls, x.shape), x)

    # ---- local windowed attention + residual (tmp never leaves VMEM) ----
    xn = _layernorm(x, ln1g[...], ln1b[...])
    mask = mask_ref[...].astype(jnp.float32) if has_mask else None
    y = _mha_batched(xn, wqkv[...], wproj[...], bproj[...], num_heads, scale,
                     rel_bias=rel_ref[...].astype(jnp.float32), mask=mask)
    tmp = x + y                                            # (G, N, C) f32, resident

    # ---- FFN: expand(tmp) + Mlp(LN2(tmp)) ----
    if has_expand:                                         # LN -> GELU -> Linear (identity path)
        xe = jax.nn.gelu(_layernorm(tmp, lneg[...], lneb[...]), approximate=False)
        ident = _bmm(xe, we[...]) + be[...]
    else:
        ident = tmp
    h = _layernorm(tmp, ln2g[...], ln2b[...])              # LN2 -> fc1 -> GELU -> fc2
    h = _bmm(h, w1[...]) + b1[...]
    h = jax.nn.gelu(h, approximate=False)
    h = _bmm(h, w2[...]) + b2[...]
    o_ref[...] = (ident + h).astype(o_ref.dtype)


# ------------------------------ pallas wrappers -------------------------------

def _full_spec(arr):
    nd = arr.ndim
    return pl.BlockSpec(arr.shape, lambda i, _nd=nd: (0,) * _nd)


def _pick_group(count, tokens_per_item, target_rows=256):
    """Largest divisor g of `count` with g*tokens <= target_rows, keeping the grid >= 2
    steps whenever count >= 2 (so both v7x TensorCores stay busy)."""
    target_g = max(1, target_rows // max(1, tokens_per_item))
    best = 1
    for g in range(1, count + 1):
        if g > target_g:
            break
        if count % g:
            continue
        if count // g >= 2 or count == 1:
            best = g
    return best


def _cls_attention(cls_tokens, norm_g, norm_b, wqkv, wproj, bproj, num_heads, scale):
    B, R, C = cls_tokens.shape
    gb = _pick_group(B, R)
    kernel = functools.partial(_cls_attn_kernel, num_heads=num_heads, scale=scale)
    return pl.pallas_call(
        kernel,
        grid=(B // gb,),
        in_specs=[pl.BlockSpec((gb, R, C), lambda i: (i, 0, 0)),
                  _full_spec(norm_g), _full_spec(norm_b),
                  _full_spec(wqkv), _full_spec(wproj), _full_spec(bproj)],
        out_specs=pl.BlockSpec((gb, R, C), lambda i: (i, 0, 0)),
        out_shape=jax.ShapeDtypeStruct((B, R, C), cls_tokens.dtype),
        compiler_params=_COMPILER_PARAMS,
    )(cls_tokens, norm_g, norm_b, wqkv, wproj, bproj)


def _local_attn_plus_ffn(out, cls_rows, mask, rel_bias, p, wqkv, wproj, w1, w2, exp_w,
                         num_heads, scale, out_channels):
    BR, N, C = out.shape
    has_mask = mask is not None
    has_expand = exp_w is not None
    g = _pick_group(BR, N)

    operands = [out, cls_rows]
    specs = [pl.BlockSpec((g, N, C), lambda i: (i, 0, 0)),
             pl.BlockSpec((g, 1, C), lambda i: (i, 0, 0))]
    if has_mask:
        operands.append(mask)
        specs.append(pl.BlockSpec((g, N, N), lambda i: (i, 0, 0)))
    tail = [rel_bias, p["norm1_g"], p["norm1_b"], wqkv, wproj, p["attn_bproj"],
            p["norm2_g"], p["norm2_b"], w1, p["mlp_b1"], w2, p["mlp_b2"]]
    if has_expand:
        tail += [p["exp_g"], p["exp_b"], exp_w, p["exp_bias"]]
    operands += tail
    specs += [_full_spec(a) for a in tail]

    kernel = functools.partial(_local_ffn_kernel, num_heads=num_heads, scale=scale,
                               has_mask=has_mask, has_expand=has_expand)
    return pl.pallas_call(
        kernel,
        grid=(BR // g,),
        in_specs=specs,
        out_specs=pl.BlockSpec((g, N, out_channels), lambda i: (i, 0, 0)),
        out_shape=jax.ShapeDtypeStruct((BR, N, out_channels), out.dtype),
        compiler_params=_COMPILER_PARAMS,
    )(*operands)


def _build_rel_bias(rel_pos, ksize, num_heads):
    """Gather the (H, K*K, K*K) relative-position bias and pad a zero cls row/col (plain JAX glue)."""
    rel_dim = 2 * ksize - 1
    coords = np.stack(np.meshgrid(np.arange(ksize), np.arange(ksize), indexing="ij"),
                      axis=-1).reshape(-1, 2)
    rel = coords[None, :, :] - coords[:, None, :]
    idx = (rel[..., 0] + ksize - 1) * rel_dim + (rel[..., 1] + ksize - 1)      # (K^2, K^2)
    bias = rel_pos[:, idx.reshape(-1)].reshape(num_heads, ksize * ksize, ksize * ksize)
    return jnp.pad(bias, ((0, 0), (1, 0), (1, 0)))    # zero bias on the cls row/column


def r2l_attention_plus_ffn(out, B, H, W, mask, p, *, num_heads, kernel_size, out_channels,
                           cls_attn=True):
    """Forward of R2LAttentionPlusFFN.

    out : (B*R, 1+K*K, Cin) tokens (row 0 of each region is its cls token)
    mask: None, or (B*R, N, N) additive attention mask
    """
    BR, N, C = out.shape
    R = BR // B
    hd = C // num_heads
    scale = hd ** -0.5
    assert N == kernel_size * kernel_size + 1

    # weights used as matmul operands -> bf16 (f32 accumulation inside the kernels)
    wqkv = p["attn_wqkv"].astype(jnp.bfloat16)
    wproj = p["attn_wproj"].astype(jnp.bfloat16)
    w1 = p["mlp_w1"].astype(jnp.bfloat16)
    w2 = p["mlp_w2"].astype(jnp.bfloat16)
    exp_w = p["exp_w"].astype(jnp.bfloat16) if C != out_channels else None

    # --- regional attention on the cls tokens ---
    cls_rows = out[:, 0:1, :]                              # (BR, 1, C)
    if cls_attn:
        cls = cls_rows.reshape(B, R, C)
        cls = _cls_attention(cls, p["norm0_g"], p["norm0_b"], wqkv, wproj, p["attn_bproj"],
                             num_heads, scale)             # cls + Attn(LN0(cls))
        cls_rows = cls.reshape(BR, 1, C)

    # --- fused local windowed attention (+rel bias, +mask) + FFN + expand ---
    rel_bias = _build_rel_bias(p["rel_pos"], kernel_size, num_heads)   # (H, N, N)
    return _local_attn_plus_ffn(out, cls_rows, mask, rel_bias, p, wqkv, wproj, w1, w2, exp_w,
                                num_heads, scale, out_channels)


# ------------------------------ pure-JAX reference -----------------------------

def _reference(out, B, mask, p, num_heads, kernel_size, out_channels):
    BR, N, C = out.shape
    R = BR // B
    hd = C // num_heads
    scale = hd ** -0.5

    def ln(x, g, b):
        mu = x.mean(-1, keepdims=True)
        var = ((x - mu) ** 2).mean(-1, keepdims=True)
        return (x - mu) / jnp.sqrt(var + EPS) * g + b

    def attn(x, bias=None):
        b_, n_, _ = x.shape
        qkv = (x @ p["attn_wqkv"]).reshape(b_, n_, 3, num_heads, hd).transpose(2, 0, 3, 1, 4)
        q, k, v = qkv[0], qkv[1], qkv[2]
        a = jnp.einsum("bhnd,bhmd->bhnm", q, k) * scale
        if bias is not None:
            a = a + bias
        a = jax.nn.softmax(a, axis=-1)
        o = jnp.einsum("bhnm,bhmd->bhnd", a, v).transpose(0, 2, 1, 3).reshape(b_, n_, C)
        return o @ p["attn_wproj"] + p["attn_bproj"]

    cls = out[:, 0:1, :].reshape(B, R, C)
    cls = cls + attn(ln(cls, p["norm0_g"], p["norm0_b"]))
    x = jnp.concatenate([cls.reshape(BR, 1, C), out[:, 1:, :]], axis=1)

    bias = _build_rel_bias(p["rel_pos"], kernel_size, num_heads)[None]
    if mask is not None:
        bias = bias + mask[:, None, :, :]
    tmp = x + attn(ln(x, p["norm1_g"], p["norm1_b"]), bias=bias)

    if C != out_channels:
        ident = jax.nn.gelu(ln(tmp, p["exp_g"], p["exp_b"]), approximate=False) \
                @ p["exp_w"] + p["exp_bias"]
    else:
        ident = tmp
    h = ln(tmp, p["norm2_g"], p["norm2_b"]) @ p["mlp_w1"] + p["mlp_b1"]
    h = jax.nn.gelu(h, approximate=False) @ p["mlp_w2"] + p["mlp_b2"]
    return ident + h


# ------------------------------------ demo ------------------------------------

if __name__ == "__main__":
    B, Hh, Ww = 2, 2, 2          # batch, region grid (H, W are passed through, unused by forward)
    R = Hh * Ww                  # regions per image
    K = 4                        # window kernel_size -> attn_map_dim (4, 4)
    N = K * K + 1                # 1 cls token + K*K patch tokens per region
    Cin, Cout = 32, 64           # input_channels != output_channels -> expand path active
    num_heads = 4
    mlp_ratio = 1.0
    hidden = int(Cout * mlp_ratio)

    key = jax.random.PRNGKey(0)
    ks = jax.random.split(key, 8)
    nrm = lambda k, s: jax.random.normal(k, s, jnp.float32) * 0.02

    params = dict(
        norm0_g=jnp.ones((1, Cin), jnp.float32), norm0_b=jnp.zeros((1, Cin), jnp.float32),
        norm1_g=jnp.ones((1, Cin), jnp.float32), norm1_b=jnp.zeros((1, Cin), jnp.float32),
        norm2_g=jnp.ones((1, Cin), jnp.float32), norm2_b=jnp.zeros((1, Cin), jnp.float32),
        attn_wqkv=nrm(ks[0], (Cin, 3 * Cin)),                 # qkv_bias=False (module default)
        attn_wproj=nrm(ks[1], (Cin, Cin)),
        attn_bproj=jnp.zeros((1, Cin), jnp.float32),
        rel_pos=nrm(ks[2], (num_heads, (2 * K - 1) ** 2)),
        mlp_w1=nrm(ks[3], (Cin, hidden)), mlp_b1=jnp.zeros((1, hidden), jnp.float32),
        mlp_w2=nrm(ks[4], (hidden, Cout)), mlp_b2=jnp.zeros((1, Cout), jnp.float32),
        exp_g=jnp.ones((1, Cin), jnp.float32), exp_b=jnp.zeros((1, Cin), jnp.float32),
        exp_w=nrm(ks[5], (Cin, Cout)), exp_bias=jnp.zeros((1, Cout), jnp.float32),
    )

    out = jax.random.normal(ks[6], (B * R, N, Cin), jnp.float32)
    mask = None   # common case: the kernel statically specializes the unmasked path

    y = r2l_attention_plus_ffn(out, B, Hh, Ww, mask, params,
                               num_heads=num_heads, kernel_size=K, out_channels=Cout)
    y = jax.block_until_ready(y)
    assert y.shape == (B * R, N, Cout) and y.dtype == jnp.float32

    y_ref = _reference(out, B, mask, params, num_heads, K, Cout)
    np.testing.assert_allclose(np.asarray(y), np.asarray(jax.block_until_ready(y_ref)),
                               rtol=5e-2, atol=2e-2)        # bf16 matmuls + approx reciprocal
    print("KERNEL_OK")
</pallas_src>

<mosaic_0001>
module attributes {stable_mosaic.version = 11 : i64} {
  func.func @_cls_attn_kernel(%arg0: i32, %arg1: memref<1x4x32xf32, #tpu.memory_space<vmem>>, %arg2: memref<1x32xf32, #tpu.memory_space<vmem>>, %arg3: memref<1x32xf32, #tpu.memory_space<vmem>>, %arg4: memref<32x96xbf16, #tpu.memory_space<vmem>>, %arg5: memref<32x32xbf16, #tpu.memory_space<vmem>>, %arg6: memref<1x32xf32, #tpu.memory_space<vmem>>, %arg7: memref<1x4x32xf32, #tpu.memory_space<vmem>>) attributes {dimension_semantics = [#tpu.dimension_semantics<parallel>], iteration_bounds = array<i64: 2>, scalar_prefetch = 0 : i64, scratch_operands = 0 : i64, tpu.core_type = #tpu.core_type<tc>, window_params = [{transform_indices = @transform_0, window_bounds = array<i64: 1, 4, 32>}, {pipeline_mode = #tpu.pipeline_mode<synchronous>, transform_indices = @transform_1, window_bounds = array<i64: 1, 32>}, {pipeline_mode = #tpu.pipeline_mode<synchronous>, transform_indices = @transform_2, window_bounds = array<i64: 1, 32>}, {pipeline_mode = #tpu.pipeline_mode<synchronous>, transform_indices = @transform_3, window_bounds = array<i64: 32, 96>}, {pipeline_mode = #tpu.pipeline_mode<synchronous>, transform_indices = @transform_4, window_bounds = array<i64: 32, 32>}, {pipeline_mode = #tpu.pipeline_mode<synchronous>, transform_indices = @transform_5, window_bounds = array<i64: 1, 32>}, {transform_indices = @transform_6, window_bounds = array<i64: 1, 4, 32>}]} {
    %c0 = arith.constant 0 : index
    %c0_0 = arith.constant 0 : index
    %c0_1 = arith.constant 0 : index
    %0 = vector.load %arg1[%c0, %c0_0, %c0_1] : memref<1x4x32xf32, #tpu.memory_space<vmem>>, vector<1x4x32xf32>
    %c0_2 = arith.constant 0 : index
    %c0_3 = arith.constant 0 : index
    %1 = vector.load %arg2[%c0_2, %c0_3] : memref<1x32xf32, #tpu.memory_space<vmem>>, vector<1x32xf32>
    %c0_4 = arith.constant 0 : index
    %c0_5 = arith.constant 0 : index
    %2 = vector.load %arg3[%c0_4, %c0_5] : memref<1x32xf32, #tpu.memory_space<vmem>>, vector<1x32xf32>
    %cst = arith.constant dense<0.000000e+00> : vector<1x4xf32>
    %3 = vector.multi_reduction <add>, %0, %cst [2] : vector<1x4x32xf32> to vector<1x4xf32>
    %4 = vector.shape_cast %3 : vector<1x4xf32> to vector<1x4x1xf32>
    %cst_6 = arith.constant 3.200000e+01 : f32
    %5 = vector.broadcast %cst_6 : f32 to vector<1x4x1xf32>
    %6 = arith.divf %4, %5 : vector<1x4x1xf32>
    %7 = vector.broadcast %6 : vector<1x4x1xf32> to vector<1x4x32xf32>
    %8 = arith.subf %0, %7 : vector<1x4x32xf32>
    %9 = arith.mulf %8, %8 : vector<1x4x32xf32>
    %cst_7 = arith.constant dense<0.000000e+00> : vector<1x4xf32>
    %10 = vector.multi_reduction <add>, %9, %cst_7 [2] : vector<1x4x32xf32> to vector<1x4xf32>
    %11 = vector.shape_cast %10 : vector<1x4xf32> to vector<1x4x1xf32>
    %cst_8 = arith.constant 3.200000e+01 : f32
    %12 = vector.broadcast %cst_8 : f32 to vector<1x4x1xf32>
    %13 = arith.divf %11, %12 : vector<1x4x1xf32>
    %14 = vector.broadcast %6 : vector<1x4x1xf32> to vector<1x4x32xf32>
    %15 = arith.subf %0, %14 : vector<1x4x32xf32>
    %cst_9 = arith.constant 9.99999974E-6 : f32
    %16 = vector.broadcast %cst_9 : f32 to vector<1x4x1xf32>
    %17 = arith.addf %13, %16 : vector<1x4x1xf32>
    %18 = math.rsqrt %17 : vector<1x4x1xf32>
    %19 = vector.broadcast %18 : vector<1x4x1xf32> to vector<1x4x32xf32>
    %20 = arith.mulf %15, %19 : vector<1x4x32xf32>
    %21 = vector.shape_cast %1 : vector<1x32xf32> to vector<1x1x32xf32>
    %22 = vector.broadcast %21 : vector<1x1x32xf32> to vector<1x4x32xf32>
    %23 = arith.mulf %20, %22 : vector<1x4x32xf32>
    %24 = vector.shape_cast %2 : vector<1x32xf32> to vector<1x1x32xf32>
    %25 = vector.broadcast %24 : vector<1x1x32xf32> to vector<1x4x32xf32>
    %26 = arith.addf %23, %25 : vector<1x4x32xf32>
    %c0_10 = arith.constant 0 : index
    %c0_11 = arith.constant 0 : index
    %27 = vector.load %arg4[%c0_10, %c0_11] : memref<32x96xbf16, #tpu.memory_space<vmem>>, vector<32x96xbf16>
    %c0_12 = arith.constant 0 : index
    %c0_13 = arith.constant 0 : index
    %28 = vector.load %arg5[%c0_12, %c0_13] : memref<32x32xbf16, #tpu.memory_space<vmem>>, vector<32x32xbf16>
    %c0_14 = arith.constant 0 : index
    %c0_15 = arith.constant 0 : index
    %29 = vector.load %arg6[%c0_14, %c0_15] : memref<1x32xf32, #tpu.memory_space<vmem>>, vector<1x32xf32>
    %30 = vector.shape_cast %27 : vector<32x96xbf16> to vector<1x32x96xbf16>
    %31 = arith.truncf %26 : vector<1x4x32xf32> to vector<1x4x32xbf16>
    "tpu.trace_start"() <{level = 10 : i32, message = "gnk,gkd->gnd"}> : () -> ()
    %cst_16 = arith.constant dense<0.000000e+00> : vector<1x4x96xf32>
    %32 = tpu.matmul %31, %30, %cst_16 {dimension_numbers = #tpu.dot_dimension_numbers<[2], [1], [1], [2], [0, 0, 0, 1, 1, 2], [0], [0]>} : vector<1x4x32xbf16>, vector<1x32x96xbf16>, vector<1x4x96xf32> -> vector<1x4x96xf32>
    "tpu.trace_stop"() : () -> ()
    %33 = vector.extract_strided_slice %32 {offsets = [0, 0, 0], sizes = [1, 4, 8], strides = [1, 1, 1]} : vector<1x4x96xf32> to vector<1x4x8xf32>
    %34 = vector.extract_strided_slice %32 {offsets = [0, 0, 32], sizes = [1, 4, 8], strides = [1, 1, 1]} : vector<1x4x96xf32> to vector<1x4x8xf32>
    %35 = vector.extract_strided_slice %32 {offsets = [0, 0, 64], sizes = [1, 4, 8], strides = [1, 1, 1]} : vector<1x4x96xf32> to vector<1x4x8xf32>
    %36 = arith.truncf %33 : vector<1x4x8xf32> to vector<1x4x8xbf16>
    %37 = arith.truncf %34 : vector<1x4x8xf32> to vector<1x4x8xbf16>
    "tpu.trace_start"() <{level = 10 : i32, message = "gnd,gmd->gnm"}> : () -> ()
    %cst_17 = arith.constant dense<0.000000e+00> : vector<1x4x4xf32>
    %38 = tpu.matmul %36, %37, %cst_17 {dimension_numbers = #tpu.dot_dimension_numbers<[2], [2], [1], [1], [0, 0, 0, 1, 1, 1], [0], [0]>} : vector<1x4x8xbf16>, vector<1x4x8xbf16>, vector<1x4x4xf32> -> vector<1x4x4xf32>
    "tpu.trace_stop"() : () -> ()
    %cst_18 = arith.constant 0.353553385 : f32
    %39 = vector.broadcast %cst_18 : f32 to vector<1x4x4xf32>
    %40 = arith.mulf %38, %39 : vector<1x4x4xf32>
    %cst_19 = arith.constant dense<0xFF800000> : vector<1x4xf32>
    %41 = vector.multi_reduction <maximumf>, %40, %cst_19 [2] : vector<1x4x4xf32> to vector<1x4xf32>
    %42 = vector.shape_cast %41 : vector<1x4xf32> to vector<1x4x1xf32>
    %43 = vector.broadcast %42 : vector<1x4x1xf32> to vector<1x4x4xf32>
    %44 = arith.subf %40, %43 : vector<1x4x4xf32>
    %45 = math.exp %44 : vector<1x4x4xf32>
    %cst_20 = arith.constant dense<0.000000e+00> : vector<1x4xf32>
    %46 = vector.multi_reduction <add>, %45, %cst_20 [2] : vector<1x4x4xf32> to vector<1x4xf32>
    %47 = vector.shape_cast %46 : vector<1x4xf32> to vector<1x4x1xf32>
    %48 = tpu.reciprocal %47 {approx = true} : vector<1x4x1xf32> -> vector<1x4x1xf32>
    %49 = vector.broadcast %48 : vector<1x4x1xf32> to vector<1x4x4xf32>
    %50 = arith.mulf %45, %49 : vector<1x4x4xf32>
    %51 = arith.truncf %50 : vector<1x4x4xf32> to vector<1x4x4xbf16>
    %52 = arith.truncf %35 : vector<1x4x8xf32> to vector<1x4x8xbf16>
    "tpu.trace_start"() <{level = 10 : i32, message = "gnm,gmd->gnd"}> : () -> ()
    %cst_21 = arith.constant dense<0.000000e+00> : vector<1x4x8xf32>
    %53 = tpu.matmul %51, %52, %cst_21 {dimension_numbers = #tpu.dot_dimension_numbers<[2], [1], [1], [2], [0, 0, 0, 1, 1, 2], [0], [0]>} : vector<1x4x4xbf16>, vector<1x4x8xbf16>, vector<1x4x8xf32> -> vector<1x4x8xf32>
    "tpu.trace_stop"() : () -> ()
    %54 = vector.extract_strided_slice %32 {offsets = [0, 0, 8], sizes = [1, 4, 8], strides = [1, 1, 1]} : vector<1x4x96xf32> to vector<1x4x8xf32>
    %55 = vector.extract_strided_slice %32 {offsets = [0, 0, 40], sizes = [1, 4, 8], strides = [1, 1, 1]} : vector<1x4x96xf32> to vector<1x4x8xf32>
    %56 = vector.extract_strided_slice %32 {offsets = [0, 0, 72], sizes = [1, 4, 8], strides = [1, 1, 1]} : vector<1x4x96xf32> to vector<1x4x8xf32>
    %57 = arith.truncf %54 : vector<1x4x8xf32> to vector<1x4x8xbf16>
    %58 = arith.truncf %55 : vector<1x4x8xf32> to vector<1x4x8xbf16>
    "tpu.trace_start"() <{level = 10 : i32, message = "gnd,gmd->gnm"}> : () -> ()
    %cst_22 = arith.constant dense<0.000000e+00> : vector<1x4x4xf32>
    %59 = tpu.matmul %57, %58, %cst_22 {dimension_numbers = #tpu.dot_dimension_numbers<[2], [2], [1], [1], [0, 0, 0, 1, 1, 1], [0], [0]>} : vector<1x4x8xbf16>, vector<1x4x8xbf16>, vector<1x4x4xf32> -> vector<1x4x4xf32>
    "tpu.trace_stop"() : () -> ()
    %cst_23 = arith.constant 0.353553385 : f32
    %60 = vector.broadcast %cst_23 : f32 to vector<1x4x4xf32>
    %61 = arith.mulf %59, %60 : vector<1x4x4xf32>
    %cst_24 = arith.constant dense<0xFF800000> : vector<1x4xf32>
    %62 = vector.multi_reduction <maximumf>, %61, %cst_24 [2] : vector<1x4x4xf32> to vector<1x4xf32>
    %63 = vector.shape_cast %62 : vector<1x4xf32> to vector<1x4x1xf32>
    %64 = vector.broadcast %63 : vector<1x4x1xf32> to vector<1x4x4xf32>
    %65 = arith.subf %61, %64 : vector<1x4x4xf32>
    %66 = math.exp %65 : vector<1x4x4xf32>
    %cst_25 = arith.constant dense<0.000000e+00> : vector<1x4xf32>
    %67 = vector.multi_reduction <add>, %66, %cst_25 [2] : vector<1x4x4xf32> to vector<1x4xf32>
    %68 = vector.shape_cast %67 : vector<1x4xf32> to vector<1x4x1xf32>
    %69 = tpu.reciprocal %68 {approx = true} : vector<1x4x1xf32> -> vector<1x4x1xf32>
    %70 = vector.broadcast %69 : vector<1x4x1xf32> to vector<1x4x4xf32>
    %71 = arith.mulf %66, %70 : vector<1x4x4xf32>
    %72 = arith.truncf %71 : vector<1x4x4xf32> to vector<1x4x4xbf16>
    %73 = arith.truncf %56 : vector<1x4x8xf32> to vector<1x4x8xbf16>
    "tpu.trace_start"() <{level = 10 : i32, message = "gnm,gmd->gnd"}> : () -> ()
    %cst_26 = arith.constant dense<0.000000e+00> : vector<1x4x8xf32>
    %74 = tpu.matmul %72, %73, %cst_26 {dimension_numbers = #tpu.dot_dimension_numbers<[2], [1], [1], [2], [0, 0, 0, 1, 1, 2], [0], [0]>} : vector<1x4x4xbf16>, vector<1x4x8xbf16>, vector<1x4x8xf32> -> vector<1x4x8xf32>
    "tpu.trace_stop"() : () -> ()
    %75 = vector.extract_strided_slice %32 {offsets = [0, 0, 16], sizes = [1, 4, 8], strides = [1, 1, 1]} : vector<1x4x96xf32> to vector<1x4x8xf32>
    %76 = vector.extract_strided_slice %32 {offsets = [0, 0, 48], sizes = [1, 4, 8], strides = [1, 1, 1]} : vector<1x4x96xf32> to vector<1x4x8xf32>
    %77 = vector.extract_strided_slice %32 {offsets = [0, 0, 80], sizes = [1, 4, 8], strides = [1, 1, 1]} : vector<1x4x96xf32> to vector<1x4x8xf32>
    %78 = arith.truncf %75 : vector<1x4x8xf32> to vector<1x4x8xbf16>
    %79 = arith.truncf %76 : vector<1x4x8xf32> to vector<1x4x8xbf16>
    "tpu.trace_start"() <{level = 10 : i32, message = "gnd,gmd->gnm"}> : () -> ()
    %cst_27 = arith.constant dense<0.000000e+00> : vector<1x4x4xf32>
    %80 = tpu.matmul %78, %79, %cst_27 {dimension_numbers = #tpu.dot_dimension_numbers<[2], [2], [1], [1], [0, 0, 0, 1, 1, 1], [0], [0]>} : vector<1x4x8xbf16>, vector<1x4x8xbf16>, vector<1x4x4xf32> -> vector<1x4x4xf32>
    "tpu.trace_stop"() : () -> ()
    %cst_28 = arith.constant 0.353553385 : f32
    %81 = vector.broadcast %cst_28 : f32 to vector<1x4x4xf32>
    %82 = arith.mulf %80, %81 : vector<1x4x4xf32>
    %cst_29 = arith.constant dense<0xFF800000> : vector<1x4xf32>
    %83 = vector.multi_reduction <maximumf>, %82, %cst_29 [2] : vector<1x4x4xf32> to vector<1x4xf32>
    %84 = vector.shape_cast %83 : vector<1x4xf32> to vector<1x4x1xf32>
    %85 = vector.broadcast %84 : vector<1x4x1xf32> to vector<1x4x4xf32>
    %86 = arith.subf %82, %85 : vector<1x4x4xf32>
    %87 = math.exp %86 : vector<1x4x4xf32>
    %cst_30 = arith.constant dense<0.000000e+00> : vector<1x4xf32>
    %88 = vector.multi_reduction <add>, %87, %cst_30 [2] : vector<1x4x4xf32> to vector<1x4xf32>
    %89 = vector.shape_cast %88 : vector<1x4xf32> to vector<1x4x1xf32>
    %90 = tpu.reciprocal %89 {approx = true} : vector<1x4x1xf32> -> vector<1x4x1xf32>
    %91 = vector.broadcast %90 : vector<1x4x1xf32> to vector<1x4x4xf32>
    %92 = arith.mulf %87, %91 : vector<1x4x4xf32>
    %93 = arith.truncf %92 : vector<1x4x4xf32> to vector<1x4x4xbf16>
    %94 = arith.truncf %77 : vector<1x4x8xf32> to vector<1x4x8xbf16>
    "tpu.trace_start"() <{level = 10 : i32, message = "gnm,gmd->gnd"}> : () -> ()
    %cst_31 = arith.constant dense<0.000000e+00> : vector<1x4x8xf32>
    %95 = tpu.matmul %93, %94, %cst_31 {dimension_numbers = #tpu.dot_dimension_numbers<[2], [1], [1], [2], [0, 0, 0, 1, 1, 2], [0], [0]>} : vector<1x4x4xbf16>, vector<1x4x8xbf16>, vector<1x4x8xf32> -> vector<1x4x8xf32>
    "tpu.trace_stop"() : () -> ()
    %96 = vector.extract_strided_slice %32 {offsets = [0, 0, 24], sizes = [1, 4, 8], strides = [1, 1, 1]} : vector<1x4x96xf32> to vector<1x4x8xf32>
    %97 = vector.extract_strided_slice %32 {offsets = [0, 0, 56], sizes = [1, 4, 8], strides = [1, 1, 1]} : vector<1x4x96xf32> to vector<1x4x8xf32>
    %98 = vector.extract_strided_slice %32 {offsets = [0, 0, 88], sizes = [1, 4, 8], strides = [1, 1, 1]} : vector<1x4x96xf32> to vector<1x4x8xf32>
    %99 = arith.truncf %96 : vector<1x4x8xf32> to vector<1x4x8xbf16>
    %100 = arith.truncf %97 : vector<1x4x8xf32> to vector<1x4x8xbf16>
    "tpu.trace_start"() <{level = 10 : i32, message = "gnd,gmd->gnm"}> : () -> ()
    %cst_32 = arith.constant dense<0.000000e+00> : vector<1x4x4xf32>
    %101 = tpu.matmul %99, %100, %cst_32 {dimension_numbers = #tpu.dot_dimension_numbers<[2], [2], [1], [1], [0, 0, 0, 1, 1, 1], [0], [0]>} : vector<1x4x8xbf16>, vector<1x4x8xbf16>, vector<1x4x4xf32> -> vector<1x4x4xf32>
    "tpu.trace_stop"() : () -> ()
    %cst_33 = arith.constant 0.353553385 : f32
    %102 = vector.broadcast %cst_33 : f32 to vector<1x4x4xf32>
    %103 = arith.mulf %101, %102 : vector<1x4x4xf32>
    %cst_34 = arith.constant dense<0xFF800000> : vector<1x4xf32>
    %104 = vector.multi_reduction <maximumf>, %103, %cst_34 [2] : vector<1x4x4xf32> to vector<1x4xf32>
    %105 = vector.shape_cast %104 : vector<1x4xf32> to vector<1x4x1xf32>
    %106 = vector.broadcast %105 : vector<1x4x1xf32> to vector<1x4x4xf32>
    %107 = arith.subf %103, %106 : vector<1x4x4xf32>
    %108 = math.exp %107 : vector<1x4x4xf32>
    %cst_35 = arith.constant dense<0.000000e+00> : vector<1x4xf32>
    %109 = vector.multi_reduction <add>, %108, %cst_35 [2] : vector<1x4x4xf32> to vector<1x4xf32>
    %110 = vector.shape_cast %109 : vector<1x4xf32> to vector<1x4x1xf32>
    %111 = tpu.reciprocal %110 {approx = true} : vector<1x4x1xf32> -> vector<1x4x1xf32>
    %112 = vector.broadcast %111 : vector<1x4x1xf32> to vector<1x4x4xf32>
    %113 = arith.mulf %108, %112 : vector<1x4x4xf32>
    %114 = arith.truncf %113 : vector<1x4x4xf32> to vector<1x4x4xbf16>
    %115 = arith.truncf %98 : vector<1x4x8xf32> to vector<1x4x8xbf16>
    "tpu.trace_start"() <{level = 10 : i32, message = "gnm,gmd->gnd"}> : () -> ()
    %cst_36 = arith.constant dense<0.000000e+00> : vector<1x4x8xf32>
    %116 = tpu.matmul %114, %115, %cst_36 {dimension_numbers = #tpu.dot_dimension_numbers<[2], [1], [1], [2], [0, 0, 0, 1, 1, 2], [0], [0]>} : vector<1x4x4xbf16>, vector<1x4x8xbf16>, vector<1x4x8xf32> -> vector<1x4x8xf32>
    "tpu.trace_stop"() : () -> ()
    %117 = tpu.concatenate %53, %74, %95, %116 in 2 : vector<1x4x8xf32>, vector<1x4x8xf32>, vector<1x4x8xf32>, vector<1x4x8xf32> -> vector<1x4x32xf32>
    %118 = vector.shape_cast %28 : vector<32x32xbf16> to vector<1x32x32xbf16>
    %119 = arith.truncf %117 : vector<1x4x32xf32> to vector<1x4x32xbf16>
    "tpu.trace_start"() <{level = 10 : i32, message = "gnk,gkd->gnd"}> : () -> ()
    %cst_37 = arith.constant dense<0.000000e+00> : vector<1x4x32xf32>
    %120 = tpu.matmul %119, %118, %cst_37 {dimension_numbers = #tpu.dot_dimension_numbers<[2], [1], [1], [2], [0, 0, 0, 1, 1, 2], [0], [0]>} : vector<1x4x32xbf16>, vector<1x32x32xbf16>, vector<1x4x32xf32> -> vector<1x4x32xf32>
    "tpu.trace_stop"() : () -> ()
    %121 = vector.shape_cast %29 : vector<1x32xf32> to vector<1x1x32xf32>
    %122 = vector.broadcast %121 : vector<1x1x32xf32> to vector<1x4x32xf32>
    %123 = arith.addf %120, %122 : vector<1x4x32xf32>
    %124 = arith.addf %0, %123 : vector<1x4x32xf32>
    %c0_38 = arith.constant 0 : index
    %c0_39 = arith.constant 0 : index
    %c0_40 = arith.constant 0 : index
    %125 = vector.load %arg7[%c0_38, %c0_39, %c0_40] : memref<1x4x32xf32, #tpu.memory_space<vmem>>, vector<1x4x32xf32>
    tpu.vector_store %arg7[%c0_38, %c0_39, %c0_40], %124 {strides = array<i32>} : memref<1x4x32xf32, #tpu.memory_space<vmem>>, vector<1x4x32xf32>,
    return
  }
  func.func @transform_0(%arg0: i32) -> (i32, i32, i32) {
    %c0_i32 = arith.constant 0 : i32
    %c0_i32_0 = arith.constant 0 : i32
    %c0_i32_1 = arith.constant 0 : i32
    return %arg0, %c0_i32, %c0_i32_0 : i32, i32, i32
  }
  func.func @transform_1(%arg0: i32) -> (i32, i32) {
    %c0_i32 = arith.constant 0 : i32
    %c0_i32_0 = arith.constant 0 : i32
    %c0_i32_1 = arith.constant 0 : i32
    return %c0_i32, %c0_i32_0 : i32, i32
  }
  func.func @transform_2(%arg0: i32) -> (i32, i32) {
    %c0_i32 = arith.constant 0 : i32
    %c0_i32_0 = arith.constant 0 : i32
    %c0_i32_1 = arith.constant 0 : i32
    return %c0_i32, %c0_i32_0 : i32, i32
  }
  func.func @transform_3(%arg0: i32) -> (i32, i32) {
    %c0_i32 = arith.constant 0 : i32
    %c0_i32_0 = arith.constant 0 : i32
    %c0_i32_1 = arith.constant 0 : i32
    return %c0_i32, %c0_i32_0 : i32, i32
  }
  func.func @transform_4(%arg0: i32) -> (i32, i32) {
    %c0_i32 = arith.constant 0 : i32
    %c0_i32_0 = arith.constant 0 : i32
    %c0_i32_1 = arith.constant 0 : i32
    return %c0_i32, %c0_i32_0 : i32, i32
  }
  func.func @transform_5(%arg0: i32) -> (i32, i32) {
    %c0_i32 = arith.constant 0 : i32
    %c0_i32_0 = arith.constant 0 : i32
    %c0_i32_1 = arith.constant 0 : i32
    return %c0_i32, %c0_i32_0 : i32, i32
  }
  func.func @transform_6(%arg0: i32) -> (i32, i32, i32) {
    %c0_i32 = arith.constant 0 : i32
    %c0_i32_0 = arith.constant 0 : i32
    %c0_i32_1 = arith.constant 0 : i32
    return %arg0, %c0_i32, %c0_i32_0 : i32, i32, i32
  }
}

</mosaic_0001>

<llo_original>
// kernel: tpu_custom_call.1
$region0: #{tpu_custom_call.1}
  #allocation0 [shape = 'u32[]', space=smem, size = 0x4, offset = 0x4, fixed_abs, tag = 'smem constant byte address 0x4 - core index']
  #allocation1 [shape = 'u32[72,128]{1,0:T(1,128)}', space=vmem, size = 0x9000, scoped, tag = 'internal scratch']
  %s0 = inlined_call_operand.hbm [shape: f32[2,4,32], index: 0, kind: input, shape index: {}]
  %s1 = inlined_call_operand.hbm [shape: f32[1,32], index: 1, kind: input, shape index: {}]
  %s2 = inlined_call_operand.vmem [shape: f32[1,32], index: 2, kind: input, shape index: {}]
  %s3 = inlined_call_operand.hbm [shape: bf16[32,96], index: 3, kind: input, shape index: {}]
  %s4 = inlined_call_operand.hbm [shape: bf16[32,32], index: 4, kind: input, shape index: {}]
  %s5 = inlined_call_operand.vmem [shape: f32[1,32], index: 5, kind: input, shape index: {}]
  %s6 = inlined_call_operand.hbm [shape: f32[2,4,32], index: 6, kind: output, shape index: {}]
  %s7 = sld [smem:[#allocation0]]
  $region73: #{tpu_custom_call.1} parent=0
    _
  %s9 = ssub.s32 1, %s7
  %s10 = scalar_select 0, %s9, %s7
  $region1: #{tpu_custom_call.1} parent=0
    #allocation2 [shape = 'u8[4096]{0}', space=vmem, size = 0x1000, scoped, tag = 'input window, operand 0']
    #allocation3 [shape = 's32[2]{0}', space=sflag, size = 0x8, scoped, tag = 'scoped memory for tpu_custom_call.1']
    #allocation4 [shape = 's32[2]{0}', space=sflag, size = 0x8, scoped, tag = 'scoped memory for tpu_custom_call.1']
    #allocation5 [shape = 'u8[512]{0}', space=vmem, size = 0x400, scoped, tag = 'input window, operand 1, single buffered']
    #allocation6 [shape = 's32[1]{0}', space=sflag, size = 0x4, scoped, tag = 'scoped memory for tpu_custom_call.1']
    #allocation7 [shape = 'u8[8192]{0}', space=vmem, size = 0x2000, scoped, tag = 'input window, operand 3, single buffered']
    #allocation8 [shape = 'u8[8192]{0}', space=vmem, size = 0x2000, scoped, tag = 'input window, operand 4, single buffered']
    #allocation9 [shape = 's32[1]{0}', space=sflag, size = 0x4, scoped, tag = 'scoped memory for tpu_custom_call.1']
    #allocation10 [shape = 'u8[4096]{0}', space=vmem, size = 0x1000, scoped, tag = 'output window, operand 0']
    %11 = vsyncpa [#allocation3], 0
    %s12 = scalar_lea.sflag [#allocation3], 1
    %13 = vsyncpa %s12, 0
    %14 = vsyncpa [#allocation6], 0
    %15 = vsyncpa [#allocation9], 0
    %16 = vsyncpa [#allocation4], 0
    %s17 = scalar_lea.sflag [#allocation4], 1
    %18 = vsyncpa %s17, 0
    loop: start=0, step=1, limit=4
    $region2: #{tpu_custom_call.1} parent=1 // loop_pre_header
      _
    $region3: #{tpu_custom_call.1} parent=1 // loop_header
      %s20 = sphi 0, %s24
      %p21 = scmp.ge.s32.totalorder %s20, 4
      %s30 = sphi 0, %s32
      %s33 = sphi 0, %s30
      %s34 = sphi 0, %s33
      %s50 = sphi 0, %s34
      %s54 = sphi 0, %s54
      %s56 = sphi 0, %s54
      %s57 = sphi 0, %s56
      %s71 = sphi 0, %s57
      %s75 = sphi 0, %s75
      %s77 = sphi 0, %s75
      %s78 = sphi 0, %s77
      %s92 = sphi 0, %s78
      %s96 = sphi 0, %s96
      %s98 = sphi 0, %s96
      %s99 = sphi 0, %s98
      %s113 = sphi 0, %s99
      %s117 = sphi 0, %s117
      %s119 = sphi 0, %s117
      %s120 = sphi 0, %s119
      %s134 = sphi 0, %s120
      %s138 = sphi 0, %s138
      %s140 = sphi 0, %s138
      %s141 = sphi 0, %s140
      %s155 = sphi 0, %s141
      %s161 = sphi 0, %s163
      %s164 = sphi 0, %s161
      %s165 = sphi 0, %s164
      %s181 = sphi 0, %s165
    $region4: #{tpu_custom_call.1} parent=1 // loop_header_branch
      %23 = sbr.rel (%p21) target = $region8
    $region5: #{tpu_custom_call.1} parent=1 // loop_body
      %s25 = ssub.s32 %s20, 1
      %s26 = ssub.s32 %s20, 2
      %s27 = sadd.s32 %s20, 1
      %s28 = ssub.s32 %s20, %s27
      %p29 = scmp.eq.s32.totalorder %s28, 0
      %s31 = sadd.s32 %s30, 1
      %s32 = scalar_select %p29, %s30, %s31
      %p35 = pneg %p29
      %p36 = scmp.eq.s32.totalorder %s20, 1
      %p37 = por %p35, %p36
      %p38 = scmp.ne.s32.totalorder %s30, %s33
      %p39 = scmp.eq.s32.totalorder %s20, 0
      %p40 = por %p38, %p39
      %p41 = scmp.ne.s32.totalorder %s30, %s33
      %p42 = scmp.eq.s32.totalorder %s25, 1
      %p43 = por %p41, %p42
      %p44 = scmp.ne.s32.totalorder %s33, %s34
      %p45 = scmp.eq.s32.totalorder %s25, 0
      %p46 = por %p44, %p45
      %p47 = scmp.ne.s32.totalorder %s33, %s34
      %p48 = scmp.eq.s32.totalorder %s26, 1
      %p49 = por %p47, %p48
      %p51 = scmp.ne.s32.totalorder %s34, %s50
      %p52 = scmp.eq.s32.totalorder %s26, 0
      %p53 = por %p51, %p52
      %s55 = sadd.s32 %s54, 1
      %p58 = scmp.eq.s32.totalorder %s20, 1
      %p59 = scmp.ne.s32.totalorder %s54, %s56
      %p60 = scmp.eq.s32.totalorder %s20, 0
      %p61 = por %p59, %p60
      %p62 = scmp.ne.s32.totalorder %s54, %s56
      %p63 = scmp.eq.s32.totalorder %s25, 1
      %p64 = por %p62, %p63
      %p65 = scmp.ne.s32.totalorder %s56, %s57
      %p66 = scmp.eq.s32.totalorder %s25, 0
      %p67 = por %p65, %p66
      %p68 = scmp.ne.s32.totalorder %s56, %s57
      %p69 = scmp.eq.s32.totalorder %s26, 1
      %p70 = por %p68, %p69
      %p72 = scmp.ne.s32.totalorder %s57, %s71
      %p73 = scmp.eq.s32.totalorder %s26, 0
      %p74 = por %p72, %p73
      %s76 = sadd.s32 %s75, 1
      %p79 = scmp.eq.s32.totalorder %s20, 1
      %p80 = scmp.ne.s32.totalorder %s75, %s77
      %p81 = scmp.eq.s32.totalorder %s20, 0
      %p82 = por %p80, %p81
      %p83 = scmp.ne.s32.totalorder %s75, %s77
      %p84 = scmp.eq.s32.totalorder %s25, 1
      %p85 = por %p83, %p84
      %p86 = scmp.ne.s32.totalorder %s77, %s78
      %p87 = scmp.eq.s32.totalorder %s25, 0
      %p88 = por %p86, %p87
      %p89 = scmp.ne.s32.totalorder %s77, %s78
      %p90 = scmp.eq.s32.totalorder %s26, 1
      %p91 = por %p89, %p90
      %p93 = scmp.ne.s32.totalorder %s78, %s92
      %p94 = scmp.eq.s32.totalorder %s26, 0
      %p95 = por %p93, %p94
      %s97 = sadd.s32 %s96, 1
      %p100 = scmp.eq.s32.totalorder %s20, 1
      %p101 = scmp.ne.s32.totalorder %s96, %s98
      %p102 = scmp.eq.s32.totalorder %s20, 0
      %p103 = por %p101, %p102
      %p104 = scmp.ne.s32.totalorder %s96, %s98
      %p105 = scmp.eq.s32.totalorder %s25, 1
      %p106 = por %p104, %p105
      %p107 = scmp.ne.s32.totalorder %s98, %s99
      %p108 = scmp.eq.s32.totalorder %s25, 0
      %p109 = por %p107, %p108
      %p110 = scmp.ne.s32.totalorder %s98, %s99
      %p111 = scmp.eq.s32.totalorder %s26, 1
      %p112 = por %p110, %p111
      %p114 = scmp.ne.s32.totalorder %s99, %s113
      %p115 = scmp.eq.s32.totalorder %s26, 0
      %p116 = por %p114, %p115
      %s118 = sadd.s32 %s117, 1
      %p121 = scmp.eq.s32.totalorder %s20, 1
      %p122 = scmp.ne.s32.totalorder %s117, %s119
      %p123 = scmp.eq.s32.totalorder %s20, 0
      %p124 = por %p122, %p123
      %p125 = scmp.ne.s32.totalorder %s117, %s119
      %p126 = scmp.eq.s32.totalorder %s25, 1
      %p127 = por %p125, %p126
      %p128 = scmp.ne.s32.totalorder %s119, %s120
      %p129 = scmp.eq.s32.totalorder %s25, 0
      %p130 = por %p128, %p129
      %p131 = scmp.ne.s32.totalorder %s119, %s120
      %p132 = scmp.eq.s32.totalorder %s26, 1
      %p133 = por %p131, %p132
      %p135 = scmp.ne.s32.totalorder %s120, %s134
      %p136 = scmp.eq.s32.totalorder %s26, 0
      %p137 = por %p135, %p136
      %s139 = sadd.s32 %s138, 1
      %p142 = scmp.eq.s32.totalorder %s20, 1
      %p143 = scmp.ne.s32.totalorder %s138, %s140
      %p144 = scmp.eq.s32.totalorder %s20, 0
      %p145 = por %p143, %p144
      %p146 = scmp.ne.s32.totalorder %s138, %s140
      %p147 = scmp.eq.s32.totalorder %s25, 1
      %p148 = por %p146, %p147
      %p149 = scmp.ne.s32.totalorder %s140, %s141
      %p150 = scmp.eq.s32.totalorder %s25, 0
      %p151 = por %p149, %p150
      %p152 = scmp.ne.s32.totalorder %s140, %s141
      %p153 = scmp.eq.s32.totalorder %s26, 1
      %p154 = por %p152, %p153
      %p156 = scmp.ne.s32.totalorder %s141, %s155
      %p157 = scmp.eq.s32.totalorder %s26, 0
      %p158 = por %p156, %p157
      %s159 = ssub.s32 %s20, %s27
      %p160 = scmp.eq.s32.totalorder %s159, 0
      %s162 = sadd.s32 %s161, 1
      %s163 = scalar_select %p160, %s161, %s162
      %p166 = pneg %p160
      %p167 = scmp.eq.s32.totalorder %s20, 1
      %p168 = por %p166, %p167
      %p169 = scmp.ne.s32.totalorder %s161, %s164
      %p170 = scmp.eq.s32.totalorder %s20, 0
      %p171 = por %p169, %p170
      %p172 = scmp.ne.s32.totalorder %s161, %s164
      %p173 = scmp.eq.s32.totalorder %s25, 1
      %p174 = por %p172, %p173
      %p175 = scmp.ne.s32.totalorder %s164, %s165
      %p176 = scmp.eq.s32.totalorder %s25, 0
      %p177 = por %p175, %p176
      %p178 = scmp.ne.s32.totalorder %s164, %s165
      %p179 = scmp.eq.s32.totalorder %s26, 1
      %p180 = por %p178, %p179
      %p182 = scmp.ne.s32.totalorder %s165, %s181
      %p183 = scmp.eq.s32.totalorder %s26, 0
      %p184 = por %p182, %p183
      %p185 = scmp.le.s32.totalorder 1, %s20
      %p186 = scmp.lt.s32.totalorder %s20, 3
      %p187 = pnand %p185, %p186
      %p188 = pneg %p187
      // Predicated region
      $region9: #{tpu_custom_call.1} parent=5 // pred_check
        _
      $region10: #{tpu_custom_call.1} parent=5 // pred_check_branch
        %190 = sbr.rel (%p187) target = $region12
      $region11: #{tpu_custom_call.1} parent=5 // pred_region
        %s191 = ssub.s32 %s20, 1
        // Predicated region
        $region13: #{tpu_custom_call.1} parent=11 // pred_check
          %p192 = pneg %p67
        $region14: #{tpu_custom_call.1} parent=11 // pred_check_branch
          %194 = sbr.rel (%p192) target = $region16
        $region15: #{tpu_custom_call.1} parent=11 // pred_region
          %196 = vsyncadd [#allocation6], 0
          %s198 = sshll.u32 %s1, 4
          %s199 = int_to_ptr.hbm [resolvable:$true] %s198
          %s200 = sshll.u32 [#allocation5], 4
          %s201 = int_to_ptr.vmem [resolvable:$true] %s200
          %203 = dma.hbm_to_vmem [thread:$0]  %s199, 16, %s201, [#allocation6]
        $region16: #{tpu_custom_call.1} parent=11 // pred_fallthru
          _
        // Predicated region
        $region17: #{tpu_custom_call.1} parent=11 // pred_check
          %p204 = pneg %p88
        $region18: #{tpu_custom_call.1} parent=11 // pred_check_branch
          %206 = sbr.rel (%p204) target = $region20
        $region19: #{tpu_custom_call.1} parent=11 // pred_region
          _
        $region20: #{tpu_custom_call.1} parent=11 // pred_fallthru
          _
        // Predicated region
        $region21: #{tpu_custom_call.1} parent=11 // pred_check
          %p207 = pneg %p109
        $region22: #{tpu_custom_call.1} parent=11 // pred_check_branch
          %209 = sbr.rel (%p207) target = $region24
        $region23: #{tpu_custom_call.1} parent=11 // pred_region
          %211 = vsyncadd [#allocation6], 0
          %s212 = sshll.u32 %s3, 4
          %s213 = int_to_ptr.hbm [resolvable:$true] %s212
          %s214 = sshll.u32 [#allocation7], 4
          %s215 = int_to_ptr.vmem [resolvable:$true] %s214
          %220 = dma.hbm_to_vmem [thread:$0]  %s213, 256, %s215, [#allocation6], 64, 64, 4
        $region24: #{tpu_custom_call.1} parent=11 // pred_fallthru
          _
        // Predicated region
        $region25: #{tpu_custom_call.1} parent=11 // pred_check
          %p221 = pneg %p130
        $region26: #{tpu_custom_call.1} parent=11 // pred_check_branch
          %223 = sbr.rel (%p221) target = $region28
        $region27: #{tpu_custom_call.1} parent=11 // pred_region
          %225 = vsyncadd [#allocation9], 0
          %s226 = sshll.u32 %s4, 4
          %s227 = int_to_ptr.hbm [resolvable:$true] %s226
          %s228 = sshll.u32 [#allocation8], 4
          %s229 = int_to_ptr.vmem [resolvable:$true] %s228
          %234 = dma.hbm_to_vmem [thread:$0]  %s227, 256, %s229, [#allocation9], 64, 64, 4
        $region28: #{tpu_custom_call.1} parent=11 // pred_fallthru
          _
        // Predicated region
        $region29: #{tpu_custom_call.1} parent=11 // pred_check
          %p235 = pneg %p151
        $region30: #{tpu_custom_call.1} parent=11 // pred_check_branch
          %237 = sbr.rel (%p235) target = $region32
        $region31: #{tpu_custom_call.1} parent=11 // pred_region
          _
        $region32: #{tpu_custom_call.1} parent=11 // pred_fallthru
          _
      $region12: #{tpu_custom_call.1} parent=5 // pred_fallthru
        _
      %p238 = scmp.lt.s32.totalorder %s20, 2
      // Predicated region
      $region33: #{tpu_custom_call.1} parent=5 // pred_check
        %p239 = pneg %p238
      $region34: #{tpu_custom_call.1} parent=5 // pred_check_branch
        %241 = sbr.rel (%p239) target = $region36
      $region35: #{tpu_custom_call.1} parent=5 // pred_region
        // Predicated region
        $region37: #{tpu_custom_call.1} parent=35 // pred_check
          %p242 = pneg %p40
        $region38: #{tpu_custom_call.1} parent=35 // pred_check_branch
          %244 = sbr.rel (%p242) target = $region40
        $region39: #{tpu_custom_call.1} parent=35 // pred_region
          %s245 = sand.u32 %s30, 1
          %s246 = scalar_lea.sflag [#allocation3], %s245
          %s247 = sand.u32 %s30, 1
          %s248 = smul.addr %s247, 4
          %s249 = scalar_lea.vmem [#allocation2], %s248
          %251 = vsyncadd %s246, 0
          %s252 = smul.addr %s20, 4
          %s253 = scalar_lea.hbm %s0, %s252
          %s255 = sshll.u32 %s253, 4
          %s256 = int_to_ptr.hbm [resolvable:$true] %s255
          %s257 = sshll.u32 %s249, 4
          %s258 = int_to_ptr.vmem [resolvable:$true] %s257
          %260 = dma.hbm_to_vmem [thread:$0]  %s256, 64, %s258, %s246
        $region40: #{tpu_custom_call.1} parent=35 // pred_fallthru
          _
      $region36: #{tpu_custom_call.1} parent=5 // pred_fallthru
        _
      %p261 = scmp.le.s32.totalorder 1, %s20
      %p262 = scmp.lt.s32.totalorder %s20, 3
      %p263 = pnand %p261, %p262
      %p264 = pneg %p263
      // Predicated region
      $region41: #{tpu_custom_call.1} parent=5 // pred_check
        _
      $region42: #{tpu_custom_call.1} parent=5 // pred_check_branch
        %266 = sbr.rel (%p263) target = $region44
      $region43: #{tpu_custom_call.1} parent=5 // pred_region
        %s267 = ssub.s32 %s20, 1
        %s268 = sand.u32 %s33, 1
        %s269 = scalar_lea.sflag [#allocation3], %s268
        %s270 = sand.u32 %s33, 1
        %s271 = smul.addr %s270, 4
        %s272 = scalar_lea.vmem [#allocation2], %s271
        // Predicated region
        $region45: #{tpu_custom_call.1} parent=43 // pred_check
          %p273 = pneg %p46
        $region46: #{tpu_custom_call.1} parent=43 // pred_check_branch
          %275 = sbr.rel (%p273) target = $region48
        $region47: #{tpu_custom_call.1} parent=43 // pred_region
          %277 = dma.done %s269, 64
        $region48: #{tpu_custom_call.1} parent=43 // pred_fallthru
          _
        // Predicated region
        $region49: #{tpu_custom_call.1} parent=43 // pred_check
          %p278 = pneg %p67
        $region50: #{tpu_custom_call.1} parent=43 // pred_check_branch
          %280 = sbr.rel (%p278) target = $region52
        $region51: #{tpu_custom_call.1} parent=43 // pred_region
          %282 = dma.done [#allocation6], 16
        $region52: #{tpu_custom_call.1} parent=43 // pred_fallthru
          _
        // Predicated region
        $region53: #{tpu_custom_call.1} parent=43 // pred_check
          %p283 = pneg %p109
        $region54: #{tpu_custom_call.1} parent=43 // pred_check_branch
          %285 = sbr.rel (%p283) target = $region56
        $region55: #{tpu_custom_call.1} parent=43 // pred_region
          %287 = dma.done [#allocation6], 256
        $region56: #{tpu_custom_call.1} parent=43 // pred_fallthru
          _
        // Predicated region
        $region57: #{tpu_custom_call.1} parent=43 // pred_check
          %p288 = pneg %p130
        $region58: #{tpu_custom_call.1} parent=43 // pred_check_branch
          %290 = sbr.rel (%p288) target = $region60
        $region59: #{tpu_custom_call.1} parent=43 // pred_region
          %292 = dma.done [#allocation9], 256
        $region60: #{tpu_custom_call.1} parent=43 // pred_fallthru
          _
        %s293 = sand.u32 %s33, 1
        %s294 = scalar_lea.sflag [#allocation3], %s293
        %s295 = sand.u32 %s33, 1
        %s296 = smul.addr %s295, 4
        %s297 = scalar_lea.vmem [#allocation2], %s296
        %p298 = pneg %p46
        %p299 = pneg %p43
        %p300 = pneg %p67
        %p301 = pneg %p64
        %p302 = pneg %p88
        %p303 = pneg %p85
        %p304 = pneg %p109
        %p305 = pneg %p106
        %p306 = pneg %p130
        %p307 = pneg %p127
        %p308 = pneg %p151
        %p309 = pneg %p148
        %p310 = pneg %p177
        %p311 = pneg %p174
        %s312 = sand.u32 %s164, 1
        %s313 = scalar_lea.sflag [#allocation4], %s312
        %s314 = sand.u32 %s164, 1
        %s315 = smul.addr %s314, 4
        %s316 = scalar_lea.vmem [#allocation10], %s315
        %v318 = vld [vmem:[%s272] sm:$0xf]
        %v319 = vld [vmem:[#allocation5] sm:$0x1]
        %v320 = vld [vmem:[%s2] sm:$0x1]
        %vm321 = vcmask 257024
        %v322 = vsel %vm321, %v318, 0.0
        %323 = vadd.xlane.f32.xlu0 %v322
        %v324 = vpop.xlane.xlu0 %323
        %v325 = vrcp.pop 32.0
        %v326 = vmul.f32 32.0, %v325
        %v327 = vsub.f32 1.0, %v326
        %v328 = vmul.f32 %v325, %v327
        %v329 = vadd.f32 %v325, %v328
        %vm330 = vweird.f32 %v325
        %v331 = vsel %vm330, %v325, %v329
        %v332 = vmul.f32 %v324, %v331
        %v333 = vsub.f32 %v318, %v332
        %v334 = vmul.f32 %v333, %v333
        %v335 = vsel %vm321, %v334, 0.0
        %336 = vadd.xlane.f32.xlu0 %v335
        %v337 = vpop.xlane.xlu0 %336
        %v338 = vmul.f32 %v337, %v331
        %v339 = vadd.f32 %v338, 1e-05
        %v340 = vrsqrt.pop %v339
        %v341 = vmul.f32 %v340, %v339
        %v342 = vmul.f32 %v341, %v340
        %v343 = vmul.f32 0.5, %v342
        %v344 = vsub.f32 1.5, %v343
        %v345 = vmul.f32 %v340, %v344
        %vm346 = vweird.f32 %v339
        %vm347 = vweird.f32 %v340
        %vm348 = vmor %vm346, %vm347
        %v349 = vsel %vm348, %v340, %v345
        %v350 = vmul.f32 %v333, %v349
        %v352 = vperm.slane %v319, 0
        %v354 = vmul.f32 %v350, %v352
        %v356 = vperm.slane %v320, 0
        %v358 = vadd.f32 %v354, %v356
        %v359 = vld [vmem:[#allocation7] sm:$0xf]
        %v360 = vld [vmem:[#allocation7 + $0x4] sm:$0xf]
        %v361 = vld [vmem:[#allocation7 + $0x8] sm:$0xf]
        %v362 = vld [vmem:[#allocation7 + $0xc] sm:$0xf]
        %v363 = vld [vmem:[#allocation8] sm:$0xf]
        %v364 = vld [vmem:[#allocation8 + $0x4] sm:$0xf]
        %v365 = vld [vmem:[#allocation8 + $0x8] sm:$0xf]
        %v366 = vld [vmem:[#allocation8 + $0xc] sm:$0xf]
        %v367 = vld [vmem:[%s5] sm:$0x1]
        %v368 = vpack.c.bf16 %v358, %v358
        %v373 = vunpack.c.l.b16 %v359
        %v374 = vunpack.c.l.b16 %v360
        %v375 = vunpack.c.l.b16 %v361
        %v376 = vunpack.c.l.b16 %v362
        %v377 = vpack.c.b16 %v374, %v373
        %v378 = vpack.c.b16 %v376, %v375
        %vm381 = vcmask 261120
        %v383 = vsel %vm381, %v368, 0
        %385 = vmatpush.bf16.msra.mxu0 0
        %386 = vmatpush.bf16.msra.mxu0 0
        %387 = vmatpush.bf16.msra.mxu0 0
        %388 = vmatpush.bf16.msra.mxu0 0
        %389 = vmatpush.bf16.msra.mxu0 0
        %390 = vmatpush.bf16.msra.mxu0 0
        %391 = vmatpush.bf16.msra.mxu0 %v378
        %392 = vmatpush.bf16.msra.mxu0 %v377
        %393 = vmatmul.bf16.gmra.mxu0 %v383
        %v394 = vpop.f32.mrf.mxu0
        %v395 = vadd.f32 0.0, %v394
        %v396 = vpop.f32.mrf.mxu0
        %397 = vdwg.mxu0
        %v398 = vpack.c.bf16 %v395, %v395
        %v400 = vunpack.c.l.b16 %v398
        %v401 = vpack.c.b16 %v400, %v400
        %402 = vrot.lane.b32.xlu0 %v401, 96
        %v403 = vpop.permute.xlu0 %402
        %vm404 = vcmask 64512
        %v406 = vsel %vm404, %v398, 0
        %v409 = vsel %vm404, %v403, 0
        %411 = vmatpush.bf16.xpose.msra.mxu0 0
        %412 = vmatpush.bf16.xpose.msra.mxu0 0
        %413 = vmatpush.bf16.xpose.msra.mxu0 0
        %414 = vmatpush.bf16.xpose.msra.mxu0 0
        %415 = vmatpush.bf16.xpose.msra.mxu0 0
        %416 = vmatpush.bf16.xpose.msra.mxu0 0
        %417 = vmatpush.bf16.xpose.msra.mxu0 0
        %418 = vmatpush.bf16.xpose.msra.mxu0 %v409
        %419 = vmatmul.bf16.gmra.mxu0 %v406
        %v420 = vpop.f32.mrf.mxu0
        %v421 = vadd.f32 0.0, %v420
        %v422 = vpop.f32.mrf.mxu0
        %423 = vdwg.mxu0
        %v424 = vmul.f32 %v421, 0.35355338
        %vm425 = vcmask 27648
        %v426 = vsel %vm425, %v424, -inf
        %427 = vmax.xlane.f32.xlu0 %v426
        %v428 = vpop.xlane.xlu0 %427
        %v429 = vsub.f32 %v424, %v428
        %v430 = vmul.f32 %v429, 1.442695
        %v431 = vpow.pop %v430
        %v432 = vsel %vm425, %v431, 0.0
        %433 = vadd.xlane.f32.xlu0 %v432
        %v434 = vpop.xlane.xlu0 %433
        %v435 = vrcp.pop %v434
        %v436 = vmul.f32 %v431, %v435
        %v437 = vpack.c.bf16 %v436, %v436
        %438 = vrot.lane.b32.xlu0 %v401, 64
        %v439 = vpop.permute.xlu0 %438
        %vm440 = vcmask 31744
        %v442 = vsel %vm440, %v437, 0
        %vm444 = vcmask 1041408
        %v446 = vsel %vm444, %v439, 0
        %448 = vmatpush.bf16.msra.mxu0 0
        %449 = vmatpush.bf16.msra.mxu0 0
        %450 = vmatpush.bf16.msra.mxu0 0
        %451 = vmatpush.bf16.msra.mxu0 0
        %452 = vmatpush.bf16.msra.mxu0 0
        %453 = vmatpush.bf16.msra.mxu0 0
        %454 = vmatpush.bf16.msra.mxu0 0
        %455 = vmatpush.bf16.msra.mxu0 %v446
        %456 = vmatmul.bf16.gmra.mxu0 %v442
        %v457 = vpop.f32.mrf.mxu0
        %v458 = vadd.f32 0.0, %v457
        %v459 = vpop.f32.mrf.mxu0
        %460 = vdwg.mxu0
        %461 = vrot.lane.b32.xlu0 %v401, 120
        %v462 = vpop.permute.xlu0 %461
        %463 = vrot.lane.b32.xlu0 %v401, 88
        %v464 = vpop.permute.xlu0 %463
        %v466 = vsel %vm404, %v462, 0
        %v469 = vsel %vm404, %v464, 0
        %471 = vmatpush.bf16.xpose.msra.mxu0 0
        %472 = vmatpush.bf16.xpose.msra.mxu0 0
        %473 = vmatpush.bf16.xpose.msra.mxu0 0
        %474 = vmatpush.bf16.xpose.msra.mxu0 0
        %475 = vmatpush.bf16.xpose.msra.mxu0 0
        %476 = vmatpush.bf16.xpose.msra.mxu0 0
        %477 = vmatpush.bf16.xpose.msra.mxu0 0
        %478 = vmatpush.bf16.xpose.msra.mxu0 %v469
        %479 = vmatmul.bf16.gmra.mxu0 %v466
        %v480 = vpop.f32.mrf.mxu0
        %v481 = vadd.f32 0.0, %v480
        %v482 = vpop.f32.mrf.mxu0
        %483 = vdwg.mxu0
        %v484 = vmul.f32 %v481, 0.35355338
        %v485 = vsel %vm425, %v484, -inf
        %486 = vmax.xlane.f32.xlu0 %v485
        %v487 = vpop.xlane.xlu0 %486
        %v488 = vsub.f32 %v484, %v487
        %v489 = vmul.f32 %v488, 1.442695
        %v490 = vpow.pop %v489
        %v491 = vsel %vm425, %v490, 0.0
        %492 = vadd.xlane.f32.xlu0 %v491
        %v493 = vpop.xlane.xlu0 %492
        %v494 = vrcp.pop %v493
        %v495 = vmul.f32 %v490, %v494
        %v496 = vpack.c.bf16 %v495, %v495
        %497 = vrot.lane.b32.xlu0 %v401, 56
        %v498 = vpop.permute.xlu0 %497
        %v500 = vsel %vm440, %v496, 0
        %v503 = vsel %vm444, %v498, 0
        %505 = vmatpush.bf16.msra.mxu0 0
        %506 = vmatpush.bf16.msra.mxu0 0
        %507 = vmatpush.bf16.msra.mxu0 0
        %508 = vmatpush.bf16.msra.mxu0 0
        %509 = vmatpush.bf16.msra.mxu0 0
        %510 = vmatpush.bf16.msra.mxu0 0
        %511 = vmatpush.bf16.msra.mxu0 0
        %512 = vmatpush.bf16.msra.mxu0 %v503
        %513 = vmatmul.bf16.gmra.mxu0 %v500
        %v514 = vpop.f32.mrf.mxu0
        %v515 = vadd.f32 0.0, %v514
        %v516 = vpop.f32.mrf.mxu0
        %517 = vdwg.mxu0
        %518 = vrot.lane.b32.xlu0 %v401, 112
        %v519 = vpop.permute.xlu0 %518
        %520 = vrot.lane.b32.xlu0 %v401, 80
        %v521 = vpop.permute.xlu0 %520
        %v523 = vsel %vm404, %v519, 0
        %v526 = vsel %vm404, %v521, 0
        %528 = vmatpush.bf16.xpose.msra.mxu0 0
        %529 = vmatpush.bf16.xpose.msra.mxu0 0
        %530 = vmatpush.bf16.xpose.msra.mxu0 0
        %531 = vmatpush.bf16.xpose.msra.mxu0 0
        %532 = vmatpush.bf16.xpose.msra.mxu0 0
        %533 = vmatpush.bf16.xpose.msra.mxu0 0
        %534 = vmatpush.bf16.xpose.msra.mxu0 0
        %535 = vmatpush.bf16.xpose.msra.mxu0 %v526
        %536 = vmatmul.bf16.gmra.mxu0 %v523
        %v537 = vpop.f32.mrf.mxu0
        %v538 = vadd.f32 0.0, %v537
        %v539 = vpop.f32.mrf.mxu0
        %540 = vdwg.mxu0
        %v541 = vmul.f32 %v538, 0.35355338
        %v542 = vsel %vm425, %v541, -inf
        %543 = vmax.xlane.f32.xlu0 %v542
        %v544 = vpop.xlane.xlu0 %543
        %v545 = vsub.f32 %v541, %v544
        %v546 = vmul.f32 %v545, 1.442695
        %v547 = vpow.pop %v546
        %v548 = vsel %vm425, %v547, 0.0
        %549 = vadd.xlane.f32.xlu0 %v548
        %v550 = vpop.xlane.xlu0 %549
        %v551 = vrcp.pop %v550
        %v552 = vmul.f32 %v547, %v551
        %v553 = vpack.c.bf16 %v552, %v552
        %554 = vrot.lane.b32.xlu0 %v401, 48
        %v555 = vpop.permute.xlu0 %554
        %v557 = vsel %vm440, %v553, 0
        %v560 = vsel %vm444, %v555, 0
        %562 = vmatpush.bf16.msra.mxu0 0
        %563 = vmatpush.bf16.msra.mxu0 0
        %564 = vmatpush.bf16.msra.mxu0 0
        %565 = vmatpush.bf16.msra.mxu0 0
        %566 = vmatpush.bf16.msra.mxu0 0
        %567 = vmatpush.bf16.msra.mxu0 0
        %568 = vmatpush.bf16.msra.mxu0 0
        %569 = vmatpush.bf16.msra.mxu0 %v560
        %570 = vmatmul.bf16.gmra.mxu0 %v557
        %v571 = vpop.f32.mrf.mxu0
        %v572 = vadd.f32 0.0, %v571
        %v573 = vpop.f32.mrf.mxu0
        %574 = vdwg.mxu0
        %575 = vrot.lane.b32.xlu0 %v401, 104
        %v576 = vpop.permute.xlu0 %575
        %577 = vrot.lane.b32.xlu0 %v401, 72
        %v578 = vpop.permute.xlu0 %577
        %v580 = vsel %vm404, %v576, 0
        %v583 = vsel %vm404, %v578, 0
        %585 = vmatpush.bf16.xpose.msra.mxu0 0
        %586 = vmatpush.bf16.xpose.msra.mxu0 0
        %587 = vmatpush.bf16.xpose.msra.mxu0 0
        %588 = vmatpush.bf16.xpose.msra.mxu0 0
        %589 = vmatpush.bf16.xpose.msra.mxu0 0
        %590 = vmatpush.bf16.xpose.msra.mxu0 0
        %591 = vmatpush.bf16.xpose.msra.mxu0 0
        %592 = vmatpush.bf16.xpose.msra.mxu0 %v583
        %593 = vmatmul.bf16.gmra.mxu0 %v580
        %v594 = vpop.f32.mrf.mxu0
        %v595 = vadd.f32 0.0, %v594
        %v596 = vpop.f32.mrf.mxu0
        %597 = vdwg.mxu0
        %v598 = vmul.f32 %v595, 0.35355338
        %v599 = vsel %vm425, %v598, -inf
        %600 = vmax.xlane.f32.xlu0 %v599
        %v601 = vpop.xlane.xlu0 %600
        %v602 = vsub.f32 %v598, %v601
        %v603 = vmul.f32 %v602, 1.442695
        %v604 = vpow.pop %v603
        %v605 = vsel %vm425, %v604, 0.0
        %606 = vadd.xlane.f32.xlu0 %v605
        %v607 = vpop.xlane.xlu0 %606
        %v608 = vrcp.pop %v607
        %v609 = vmul.f32 %v604, %v608
        %v610 = vpack.c.bf16 %v609, %v609
        %611 = vrot.lane.b32.xlu0 %v401, 40
        %v612 = vpop.permute.xlu0 %611
        %v614 = vsel %vm440, %v610, 0
        %v617 = vsel %vm444, %v612, 0
        %619 = vmatpush.bf16.msra.mxu0 0
        %620 = vmatpush.bf16.msra.mxu0 0
        %621 = vmatpush.bf16.msra.mxu0 0
        %622 = vmatpush.bf16.msra.mxu0 0
        %623 = vmatpush.bf16.msra.mxu0 0
        %624 = vmatpush.bf16.msra.mxu0 0
        %625 = vmatpush.bf16.msra.mxu0 0
        %626 = vmatpush.bf16.msra.mxu0 %v617
        %627 = vmatmul.bf16.gmra.mxu0 %v614
        %v628 = vpop.f32.mrf.mxu0
        %v629 = vadd.f32 0.0, %v628
        %v630 = vpop.f32.mrf.mxu0
        %631 = vdwg.mxu0
        %633 = vrot.lane.b32.xlu0 %v515, 8
        %v634 = vpop.permute.xlu0 %633
        %637 = vrot.lane.b32.xlu0 %v572, 16
        %v638 = vpop.permute.xlu0 %637
        %641 = vrot.lane.b32.xlu0 %v629, 24
        %v642 = vpop.permute.xlu0 %641
        %v644 = vsel %vm404, %v458, %v634
        %vm645 = vcmask 130048
        %v646 = vsel %vm645, %v644, %v638
        %vm647 = vcmask 195584
        %v648 = vsel %vm647, %v646, %v642
        %v649 = vpack.c.bf16 %v648, %v648
        %v651 = vperm.slane %v367, 0
        %v657 = vunpack.c.l.b16 %v363
        %v658 = vunpack.c.l.b16 %v364
        %v659 = vunpack.c.l.b16 %v365
        %v660 = vunpack.c.l.b16 %v366
        %v661 = vpack.c.b16 %v658, %v657
        %v662 = vpack.c.b16 %v660, %v659
        %v666 = vsel %vm381, %v649, 0
        %668 = vmatpush.bf16.msra.mxu0 0
        %669 = vmatpush.bf16.msra.mxu0 0
        %670 = vmatpush.bf16.msra.mxu0 0
        %671 = vmatpush.bf16.msra.mxu0 0
        %672 = vmatpush.bf16.msra.mxu0 0
        %673 = vmatpush.bf16.msra.mxu0 0
        %674 = vmatpush.bf16.msra.mxu0 %v662
        %675 = vmatpush.bf16.msra.mxu0 %v661
        %676 = vmatmul.bf16.gmra.mxu0 %v666
        %v677 = vpop.f32.mrf.mxu0
        %v678 = vadd.f32 %v651, %v677
        %v679 = vpop.f32.mrf.mxu0
        %680 = vdwg.mxu0
        %v681 = vadd.f32 %v318, %v678
        %682 = vst.msk [vmem:[%s316] sm:$0xf] %vm321, %v681
        %s683 = sand.u32 %s164, 1
        %s684 = scalar_lea.sflag [#allocation4], %s683
        %s685 = sand.u32 %s164, 1
        %s686 = smul.addr %s685, 4
        %s687 = scalar_lea.vmem [#allocation10], %s686
        // Predicated region
        $region61: #{tpu_custom_call.1} parent=43 // pred_check
          %p688 = pneg %p174
        $region62: #{tpu_custom_call.1} parent=43 // pred_check_branch
          %690 = sbr.rel (%p688) target = $region64
        $region63: #{tpu_custom_call.1} parent=43 // pred_region
          %692 = vsyncadd %s684, 0
          %s693 = smul.addr %s25, 4
          %s694 = scalar_lea.hbm %s6, %s693
          %s696 = sshll.u32 %s687, 4
          %s697 = int_to_ptr.vmem [resolvable:$true] %s696
          %s698 = sshll.u32 %s694, 4
          %s699 = int_to_ptr.hbm [resolvable:$true] %s698
          %701 = dma.vmem_to_hbm [thread:$0]  %s697, 64, %s699, %s684
        $region64: #{tpu_custom_call.1} parent=43 // pred_fallthru
          _
      $region44: #{tpu_custom_call.1} parent=5 // pred_fallthru
        _
      %p702 = scmp.le.s32.totalorder 2, %s20
      // Predicated region
      $region65: #{tpu_custom_call.1} parent=5 // pred_check
        %p703 = pneg %p702
      $region66: #{tpu_custom_call.1} parent=5 // pred_check_branch
        %705 = sbr.rel (%p703) target = $region68
      $region67: #{tpu_custom_call.1} parent=5 // pred_region
        %s706 = ssub.s32 %s20, 2
        // Predicated region
        $region69: #{tpu_custom_call.1} parent=67 // pred_check
          %p707 = pneg %p180
        $region70: #{tpu_custom_call.1} parent=67 // pred_check_branch
          %709 = sbr.rel (%p707) target = $region72
        $region71: #{tpu_custom_call.1} parent=67 // pred_region
          %s710 = sand.u32 %s165, 1
          %s711 = scalar_lea.sflag [#allocation4], %s710
          %s712 = sand.u32 %s165, 1
          %s713 = smul.addr %s712, 4
          %s714 = scalar_lea.vmem [#allocation10], %s713
          %716 = dma.done %s711, 64
        $region72: #{tpu_custom_call.1} parent=67 // pred_fallthru
          _
      $region68: #{tpu_custom_call.1} parent=5 // pred_fallthru
        _
    $region6: #{tpu_custom_call.1} parent=1 // loop_footer
      %s24 = sadd.s32 1, %s20
    $region7: #{tpu_custom_call.1} parent=1 // loop_footer_branch
      %19 = sbr.rel target = $region3
    $region8: #{tpu_custom_call.1} parent=1 // loop_exit
      _
    %717 = vsyncpa [#allocation3], 1
    %s718 = scalar_lea.sflag [#allocation3], 1
    %719 = vsyncpa %s718, 1
    %720 = vsyncpa [#allocation6], 1
    %721 = vsyncpa [#allocation9], 1
    %722 = vsyncpa [#allocation4], 1
    %s723 = scalar_lea.sflag [#allocation4], 1
    %724 = vsyncpa %s723, 1

</llo_original>
